<compile_context>
chip_gen: v5e
topology: v5e:2x2
jax: 0.10.0
libtpu: 0.0.40
codegen_flags: <defaults>
</compile_context>

<pallas_src>
import functools
import math

import jax
import jax.numpy as jnp
from jax import lax
from jax.experimental import pallas as pl
from jax.experimental.pallas import tpu as pltpu


def _attention_head_kernel(x_ref, wqkv_ref, bqkv_ref, o_ref, *,
                           batch, seq_len, head_size):
    # x_ref    : (B*T, C)  f32   all batch rows folded into the row dim
    # wqkv_ref : (C, 3H)   f32   packed [wq*scale | wk | wv]
    # bqkv_ref : (1, 3H)   f32   packed [bq*scale | bk | bv]
    # o_ref    : (B*T, H)  f32
    H, T = head_size, seq_len

    x = x_ref[...]                                                    # (B*T, C)

    # One fused QKV projection for every (batch, token) row, f32 accumulation.
    qkv = jnp.dot(x, wqkv_ref[...], preferred_element_type=jnp.float32)
    qkv = qkv + bqkv_ref[...]                                         # (B*T, 3H)

    q = qkv[:, 0:H]          # already scaled by C**-0.5 (folded into weights)
    k = qkv[:, H:2 * H]
    v = qkv[:, 2 * H:3 * H]

    # Causal mask built once in-kernel; shared by every batch block.
    row = lax.broadcasted_iota(jnp.int32, (T, T), 0)
    col = lax.broadcasted_iota(jnp.int32, (T, T), 1)
    causal = row >= col

    # B is tiny and static -> unroll it in Python. Static slices along the
    # sublane dim (multiples of T=8) are free; no grid-step overhead remains.
    for b in range(batch):
        lo, hi = b * T, (b + 1) * T
        qb = q[lo:hi, :]
        kb = k[lo:hi, :]
        vb = v[lo:hi, :]

        # Scores: contract the head dim directly (no explicit transpose).
        wei = lax.dot_general(
            qb, kb, dimension_numbers=(((1,), (1,)), ((), ())),
            preferred_element_type=jnp.float32)                       # (T, T)
        wei = jnp.where(causal, wei, -jnp.inf)

        # Numerically stable softmax in f32; reciprocal runs on the EUP slot.
        m = jnp.max(wei, axis=-1, keepdims=True)
        e = jnp.exp(wei - m)
        p = e * pl.reciprocal(jnp.sum(e, axis=-1, keepdims=True), approx=True)

        # TODO(synk): nn.Dropout(p=0.2) is a stochastic training-mode op;
        # implemented here with eval semantics (identity).

        o_ref[lo:hi, :] = jnp.dot(p, vb, preferred_element_type=jnp.float32)


def pack_qkv_params(wk, bk, wq, bq, wv, bv, n_emb):
    """Pack the three Linear layers into one (C, 3H) weight / (1, 3H) bias,
    folding the C**-0.5 attention scale into the q projection.
    Call ONCE (at init), not per forward call."""
    scale = n_emb ** (-0.5)
    wqkv = jnp.concatenate([wq * scale, wk, wv], axis=1).astype(jnp.float32)
    bqkv = jnp.concatenate([bq * scale, bk, bv], axis=1).astype(jnp.float32)
    return wqkv, bqkv


@jax.jit
def attention_head(x, wqkv, bqkv):
    """x: (B, T, C) f32; wqkv: (C, 3H) f32; bqkv: (1, 3H) f32 -> (B, T, H) f32."""
    B, T, C = x.shape
    H = wqkv.shape[1] // 3
    x2d = x.reshape(B * T, C)   # fold batch into rows; metadata-only reshape

    kernel = functools.partial(_attention_head_kernel,
                               batch=B, seq_len=T, head_size=H)

    out2d = pl.pallas_call(
        kernel,
        out_shape=jax.ShapeDtypeStruct((B * T, H), jnp.float32),
        in_specs=[pl.BlockSpec(memory_space=pltpu.MemorySpace.VMEM)] * 3,
        out_specs=pl.BlockSpec(memory_space=pltpu.MemorySpace.VMEM),
    )(x2d, wqkv, bqkv)

    return out2d.reshape(B, T, H)


def init_params(key, n_emb, head_size):
    """Deterministic torch-Linear-style init: U(-1/sqrt(fan_in), 1/sqrt(fan_in))."""
    bound = 1.0 / math.sqrt(n_emb)
    keys = jax.random.split(key, 6)

    def lin(kw, kb):
        w = jax.random.uniform(kw, (n_emb, head_size), jnp.float32, -bound, bound)
        b = jax.random.uniform(kb, (1, head_size), jnp.float32, -bound, bound)
        return w, b

    wk, bk = lin(keys[0], keys[1])
    wq, bq = lin(keys[2], keys[3])
    wv, bv = lin(keys[4], keys[5])
    return wk, bk, wq, bq, wv, bv


def reference(x, wk, bk, wq, bq, wv, bv, tril):
    """Plain-JAX f32 reference of the torch forward (eval mode)."""
    B, T, C = x.shape
    k = x @ wk + bk
    q = x @ wq + bq
    v = x @ wv + bv
    wei = (q @ jnp.swapaxes(k, -2, -1)) * C ** (-0.5)
    wei = jnp.where(tril[:T, :T] == 0.0, -jnp.inf, wei)
    wei = jax.nn.softmax(wei, axis=-1)
    return wei @ v


if __name__ == "__main__":
    # Small shapes consistent with the module:
    # B=2, T=block_size=8, n_emb=32, head_size=16
    B, T, n_emb, head_size, block_size = 2, 8, 32, 16, 8

    root = jax.random.PRNGKey(0)
    kx, kp = jax.random.split(root)
    x = jax.random.normal(kx, (B, T, n_emb), jnp.float32)
    wk, bk, wq, bq, wv, bv = init_params(kp, n_emb, head_size)
    tril = jnp.tril(jnp.ones((block_size, block_size), jnp.float32))

    # Weight packing hoisted out of the forward path: done exactly once here.
    wqkv, bqkv = jax.block_until_ready(
        pack_qkv_params(wk, bk, wq, bq, wv, bv, n_emb))

    out = attention_head(x, wqkv, bqkv)
    out = jax.block_until_ready(out)

    ref = reference(x, wk, bk, wq, bq, wv, bv, tril)
    assert out.shape == (B, T, head_size), out.shape
    # Everything is f32 except the approx softmax reciprocal -> tight tolerance.
    err = float(jnp.max(jnp.abs(out - ref)))
    assert jnp.allclose(out, ref, atol=1e-2, rtol=1e-2), err

    print("KERNEL_OK")
</pallas_src>

<mosaic_0001>
module attributes {stable_mosaic.version = 11 : i64} {
  func.func @_attention_head_kernel(%arg0: memref<16x32xf32, #tpu.memory_space<vmem>>, %arg1: memref<32x48xf32, #tpu.memory_space<vmem>>, %arg2: memref<1x48xf32, #tpu.memory_space<vmem>>, %arg3: memref<16x16xf32, #tpu.memory_space<vmem>>) attributes {dimension_semantics = [], scalar_prefetch = 0 : i64, scratch_operands = 0 : i64, tpu.core_type = #tpu.core_type<tc>} {
    %c0 = arith.constant 0 : index
    %c0_0 = arith.constant 0 : index
    %0 = vector.load %arg0[%c0, %c0_0] : memref<16x32xf32, #tpu.memory_space<vmem>>, vector<16x32xf32>
    %c0_1 = arith.constant 0 : index
    %c0_2 = arith.constant 0 : index
    %1 = vector.load %arg1[%c0_1, %c0_2] : memref<32x48xf32, #tpu.memory_space<vmem>>, vector<32x48xf32>
    %cst = arith.constant dense<0.000000e+00> : vector<16x48xf32>
    %2 = tpu.matmul %0, %1, %cst {dimension_numbers = #tpu.dot_dimension_numbers<[1], [0], [0], [1], [0, 0, 1, 1], [], []>} : vector<16x32xf32>, vector<32x48xf32>, vector<16x48xf32> -> vector<16x48xf32>
    %c0_3 = arith.constant 0 : index
    %c0_4 = arith.constant 0 : index
    %3 = vector.load %arg2[%c0_3, %c0_4] : memref<1x48xf32, #tpu.memory_space<vmem>>, vector<1x48xf32>
    %4 = vector.broadcast %3 : vector<1x48xf32> to vector<16x48xf32>
    %5 = arith.addf %2, %4 : vector<16x48xf32>
    %6 = vector.extract_strided_slice %5 {offsets = [0, 0], sizes = [16, 16], strides = [1, 1]} : vector<16x48xf32> to vector<16x16xf32>
    %7 = vector.extract_strided_slice %5 {offsets = [0, 16], sizes = [16, 16], strides = [1, 1]} : vector<16x48xf32> to vector<16x16xf32>
    %8 = vector.extract_strided_slice %5 {offsets = [0, 32], sizes = [16, 16], strides = [1, 1]} : vector<16x48xf32> to vector<16x16xf32>
    %9 = tpu.iota {dimensions = array<i32: 0>} : vector<8x8xi32>
    %10 = tpu.iota {dimensions = array<i32: 1>} : vector<8x8xi32>
    %11 = arith.cmpi sge, %9, %10 : vector<8x8xi32>
    %12 = vector.extract_strided_slice %6 {offsets = [0, 0], sizes = [8, 16], strides = [1, 1]} : vector<16x16xf32> to vector<8x16xf32>
    %13 = vector.extract_strided_slice %7 {offsets = [0, 0], sizes = [8, 16], strides = [1, 1]} : vector<16x16xf32> to vector<8x16xf32>
    %14 = vector.extract_strided_slice %8 {offsets = [0, 0], sizes = [8, 16], strides = [1, 1]} : vector<16x16xf32> to vector<8x16xf32>
    %cst_5 = arith.constant dense<0.000000e+00> : vector<8x8xf32>
    %15 = tpu.matmul %12, %13, %cst_5 {dimension_numbers = #tpu.dot_dimension_numbers<[1], [1], [0], [0], [0, 0, 1, 0], [], []>} : vector<8x16xf32>, vector<8x16xf32>, vector<8x8xf32> -> vector<8x8xf32>
    %cst_6 = arith.constant 0xFF800000 : f32
    %16 = vector.broadcast %cst_6 : f32 to vector<8x8xf32>
    %17 = arith.select %11, %15, %16 : vector<8x8xi1>, vector<8x8xf32>
    %cst_7 = arith.constant dense<0xFF800000> : vector<8xf32>
    %18 = vector.multi_reduction <maximumf>, %17, %cst_7 [1] : vector<8x8xf32> to vector<8xf32>
    %19 = vector.shape_cast %18 : vector<8xf32> to vector<8x1xf32>
    %20 = vector.broadcast %19 : vector<8x1xf32> to vector<8x8xf32>
    %21 = arith.subf %17, %20 : vector<8x8xf32>
    %22 = math.exp %21 : vector<8x8xf32>
    %cst_8 = arith.constant dense<0.000000e+00> : vector<8xf32>
    %23 = vector.multi_reduction <add>, %22, %cst_8 [1] : vector<8x8xf32> to vector<8xf32>
    %24 = vector.shape_cast %23 : vector<8xf32> to vector<8x1xf32>
    %25 = tpu.reciprocal %24 {approx = true} : vector<8x1xf32> -> vector<8x1xf32>
    %26 = vector.broadcast %25 : vector<8x1xf32> to vector<8x8xf32>
    %27 = arith.mulf %22, %26 : vector<8x8xf32>
    %cst_9 = arith.constant dense<0.000000e+00> : vector<8x16xf32>
    %28 = tpu.matmul %27, %14, %cst_9 {dimension_numbers = #tpu.dot_dimension_numbers<[1], [0], [0], [1], [0, 0, 1, 1], [], []>} : vector<8x8xf32>, vector<8x16xf32>, vector<8x16xf32> -> vector<8x16xf32>
    %c0_10 = arith.constant 0 : index
    %c0_11 = arith.constant 0 : index
    %29 = vector.load %arg3[%c0_10, %c0_11] : memref<16x16xf32, #tpu.memory_space<vmem>>, vector<8x16xf32>
    tpu.vector_store %arg3[%c0_10, %c0_11], %28 {strides = array<i32>} : memref<16x16xf32, #tpu.memory_space<vmem>>, vector<8x16xf32>,
    %30 = vector.extract_strided_slice %6 {offsets = [8, 0], sizes = [8, 16], strides = [1, 1]} : vector<16x16xf32> to vector<8x16xf32>
    %31 = vector.extract_strided_slice %7 {offsets = [8, 0], sizes = [8, 16], strides = [1, 1]} : vector<16x16xf32> to vector<8x16xf32>
    %32 = vector.extract_strided_slice %8 {offsets = [8, 0], sizes = [8, 16], strides = [1, 1]} : vector<16x16xf32> to vector<8x16xf32>
    %cst_12 = arith.constant dense<0.000000e+00> : vector<8x8xf32>
    %33 = tpu.matmul %30, %31, %cst_12 {dimension_numbers = #tpu.dot_dimension_numbers<[1], [1], [0], [0], [0, 0, 1, 0], [], []>} : vector<8x16xf32>, vector<8x16xf32>, vector<8x8xf32> -> vector<8x8xf32>
    %cst_13 = arith.constant 0xFF800000 : f32
    %34 = vector.broadcast %cst_13 : f32 to vector<8x8xf32>
    %35 = arith.select %11, %33, %34 : vector<8x8xi1>, vector<8x8xf32>
    %cst_14 = arith.constant dense<0xFF800000> : vector<8xf32>
    %36 = vector.multi_reduction <maximumf>, %35, %cst_14 [1] : vector<8x8xf32> to vector<8xf32>
    %37 = vector.shape_cast %36 : vector<8xf32> to vector<8x1xf32>
    %38 = vector.broadcast %37 : vector<8x1xf32> to vector<8x8xf32>
    %39 = arith.subf %35, %38 : vector<8x8xf32>
    %40 = math.exp %39 : vector<8x8xf32>
    %cst_15 = arith.constant dense<0.000000e+00> : vector<8xf32>
    %41 = vector.multi_reduction <add>, %40, %cst_15 [1] : vector<8x8xf32> to vector<8xf32>
    %42 = vector.shape_cast %41 : vector<8xf32> to vector<8x1xf32>
    %43 = tpu.reciprocal %42 {approx = true} : vector<8x1xf32> -> vector<8x1xf32>
    %44 = vector.broadcast %43 : vector<8x1xf32> to vector<8x8xf32>
    %45 = arith.mulf %40, %44 : vector<8x8xf32>
    %cst_16 = arith.constant dense<0.000000e+00> : vector<8x16xf32>
    %46 = tpu.matmul %45, %32, %cst_16 {dimension_numbers = #tpu.dot_dimension_numbers<[1], [0], [0], [1], [0, 0, 1, 1], [], []>} : vector<8x8xf32>, vector<8x16xf32>, vector<8x16xf32> -> vector<8x16xf32>
    %c8 = arith.constant 8 : index
    %c0_17 = arith.constant 0 : index
    %47 = vector.load %arg3[%c8, %c0_17] : memref<16x16xf32, #tpu.memory_space<vmem>>, vector<8x16xf32>
    tpu.vector_store %arg3[%c8, %c0_17], %46 {strides = array<i32>} : memref<16x16xf32, #tpu.memory_space<vmem>>, vector<8x16xf32>,
    return
  }
}

</mosaic_0001>

<llo_original>
// kernel: attention_head.1
$region0: #{attention_head.1}
  #allocation0 [shape = 'u32[]', space=smem, size = 0x4, offset = 0x4, fixed_abs, tag = 'smem constant byte address 0x4 - core index']
  #allocation1 [shape = 'u32[72,128]{1,0:T(1,128)}', space=vmem, size = 0x9000, scoped, tag = 'internal scratch']
  %s0 = inlined_call_operand.hbm [shape: f32[16,32], index: 0, kind: input, shape index: {}]
  %s1 = inlined_call_operand.hbm [shape: f32[32,48], index: 1, kind: input, shape index: {}]
  %s2 = inlined_call_operand.vmem [shape: f32[1,48], index: 2, kind: input, shape index: {}]
  %s3 = inlined_call_operand.hbm [shape: f32[16,16], index: 3, kind: output, shape index: {}]
  %s4 = sld [smem:[#allocation0]]
  $region30: #{attention_head.1} parent=0
    _
  %s6 = ssub.s32 1, %s4
  %s7 = scalar_select 0, %s6, %s4
  $region1: #{attention_head.1} parent=0
    #allocation2 [shape = 'u8[8192]{0}', space=vmem, size = 0x2000, scoped, tag = 'input window, operand 0, single buffered']
    #allocation3 [shape = 's32[1]{0}', space=sflag, size = 0x4, scoped, tag = 'scoped memory for attention_head.1']
    #allocation4 [shape = 's32[1]{0}', space=sflag, size = 0x4, scoped, tag = 'scoped memory for attention_head.1']
    #allocation5 [shape = 'u8[16384]{0}', space=vmem, size = 0x4000, scoped, tag = 'input window, operand 1, single buffered']
    #allocation6 [shape = 's32[1]{0}', space=sflag, size = 0x4, scoped, tag = 'scoped memory for attention_head.1']
    #allocation7 [shape = 'u8[8192]{0}', space=vmem, size = 0x2000, scoped, tag = 'output window, operand 0, single buffered']
    %8 = vsyncpa [#allocation3], 0
    %9 = vsyncpa [#allocation6], 0
    %10 = vsyncpa [#allocation4], 0
    // Predicated region
    $region2: #{attention_head.1} parent=1 // pred_check
      _
    $region3: #{attention_head.1} parent=1 // pred_check_branch
      %12 = sbr.rel (0) target = $region5
    $region4: #{attention_head.1} parent=1 // pred_region
      %14 = vsyncadd [#allocation3], 0
      %s15 = sshll.u32 %s0, 4
      %s16 = int_to_ptr.hbm [resolvable:$true] %s15
      %s17 = sshll.u32 [#allocation2], 4
      %s18 = int_to_ptr.vmem [resolvable:$true] %s17
      %23 = dma.hbm_to_vmem [thread:$0]  %s16, 256, %s18, [#allocation3], 128, 128, 8
    $region5: #{attention_head.1} parent=1 // pred_fallthru
      _
    // Predicated region
    $region6: #{attention_head.1} parent=1 // pred_check
      _
    $region7: #{attention_head.1} parent=1 // pred_check_branch
      %25 = sbr.rel (0) target = $region9
    $region8: #{attention_head.1} parent=1 // pred_region
      %27 = vsyncadd [#allocation6], 0
      %s28 = sshll.u32 %s1, 4
      %s29 = int_to_ptr.hbm [resolvable:$true] %s28
      %s30 = sshll.u32 [#allocation5], 4
      %s31 = int_to_ptr.vmem [resolvable:$true] %s30
      %36 = dma.hbm_to_vmem [thread:$0]  %s29, 512, %s31, [#allocation6], 128, 128, 8
    $region9: #{attention_head.1} parent=1 // pred_fallthru
      _
    // Predicated region
    $region10: #{attention_head.1} parent=1 // pred_check
      _
    $region11: #{attention_head.1} parent=1 // pred_check_branch
      %38 = sbr.rel (0) target = $region13
    $region12: #{attention_head.1} parent=1 // pred_region
      _
    $region13: #{attention_head.1} parent=1 // pred_fallthru
      _
    // Predicated region
    $region14: #{attention_head.1} parent=1 // pred_check
      _
    $region15: #{attention_head.1} parent=1 // pred_check_branch
      %40 = sbr.rel (0) target = $region17
    $region16: #{attention_head.1} parent=1 // pred_region
      %42 = dma.done [#allocation3], 256
    $region17: #{attention_head.1} parent=1 // pred_fallthru
      _
    // Predicated region
    $region18: #{attention_head.1} parent=1 // pred_check
      _
    $region19: #{attention_head.1} parent=1 // pred_check_branch
      %44 = sbr.rel (0) target = $region21
    $region20: #{attention_head.1} parent=1 // pred_region
      %46 = dma.done [#allocation6], 512
    $region21: #{attention_head.1} parent=1 // pred_fallthru
      _
    %v47 = vld [vmem:[#allocation2] sm:$0xff]
    %v48 = vld [vmem:[#allocation2 + $0x8] sm:$0xff]
    %v49 = vld [vmem:[#allocation5] sm:$0xff]
    %v50 = vld [vmem:[#allocation5 + $0x8] sm:$0xff]
    %v51 = vld [vmem:[#allocation5 + $0x10] sm:$0xff]
    %v52 = vld [vmem:[#allocation5 + $0x18] sm:$0xff]
    %v53 = vld [vmem:[%s2] sm:$0x1]
    %v55 = vperm.slane %v53, 0
    %vm57 = vcmask 261120
    %v59 = vsel %vm57, %v47, 0
    %v62 = vsel %vm57, %v48, 0
    %64 = vmatpush.msra.mxu0 0.0
    %65 = vmatpush.msra.mxu0 0.0
    %66 = vmatpush.msra.mxu0 0.0
    %67 = vmatpush.msra.mxu0 0.0
    %68 = vmatpush.msra.mxu0 0.0
    %69 = vmatpush.msra.mxu0 0.0
    %70 = vmatpush.msra.mxu0 0.0
    %71 = vmatpush.msra.mxu0 0.0
    %72 = vmatpush.msra.mxu0 0.0
    %73 = vmatpush.msra.mxu0 0.0
    %74 = vmatpush.msra.mxu0 0.0
    %75 = vmatpush.msra.mxu0 0.0
    %76 = vmatpush.msra.mxu0 %v52
    %77 = vmatpush.msra.mxu0 %v51
    %78 = vmatpush.msra.mxu0 %v50
    %79 = vmatpush.msra.mxu0 %v49
    %80 = vmatmul.f32.gmra.mxu0 %v59
    %v81 = vpop.f32.mrf.mxu0
    %v82 = vadd.f32 %v55, %v81
    %83 = vmatmul.f32.gmra.mxu0 %v62
    %v84 = vpop.f32.mrf.mxu0
    %v85 = vadd.f32 %v55, %v84
    %86 = vdwg.mxu0
    %v87 = vlaneseq
    %v88 = vshrl.u32 %v87, 7
    %v89 = vlaneseq
    %v90 = vand.u32 %v89, 127
    %vm91 = vcmp.ge.s32.totalorder %v88, %v90
    %93 = vrot.lane.b32.xlu0 %v82, 112
    %v94 = vpop.permute.xlu0 %93
    %vm95 = vcmask 130048
    %v96 = vsel %vm95, %v82, 0
    %v98 = vsel %vm95, %v94, 0
    %100 = vmatpush.xpose.msra.mxu0 0.0
    %101 = vmatpush.xpose.msra.mxu0 0.0
    %102 = vmatpush.xpose.msra.mxu0 0.0
    %103 = vmatpush.xpose.msra.mxu0 0.0
    %104 = vmatpush.xpose.msra.mxu0 0.0
    %105 = vmatpush.xpose.msra.mxu0 0.0
    %106 = vmatpush.xpose.msra.mxu0 0.0
    %107 = vmatpush.xpose.msra.mxu0 0.0
    %108 = vmatpush.xpose.msra.mxu0 0.0
    %109 = vmatpush.xpose.msra.mxu0 0.0
    %110 = vmatpush.xpose.msra.mxu0 0.0
    %111 = vmatpush.xpose.msra.mxu0 0.0
    %112 = vmatpush.xpose.msra.mxu0 0.0
    %113 = vmatpush.xpose.msra.mxu0 0.0
    %114 = vmatpush.xpose.msra.mxu0 0.0
    %115 = vmatpush.xpose.msra.mxu0 %v98
    %116 = vmatmul.f32.gmra.mxu0 %v96
    %v117 = vpop.f32.mrf.mxu0
    %v118 = vadd.f32 0.0, %v117
    %119 = vdwg.mxu0
    %v120 = vsel %vm91, %v118, -inf
    %vm121 = vcmask 64512
    %v122 = vsel %vm121, %v120, -inf
    %123 = vmax.xlane.f32.xlu0 %v122
    %v124 = vpop.xlane.xlu0 %123
    %v125 = vsub.f32 %v120, %v124
    %v126 = vmul.f32 %v125, 1.442695
    %v127 = vpow.pop %v126
    %v128 = vsel %vm121, %v127, 0.0
    %129 = vadd.xlane.f32.xlu0 %v128
    %v130 = vpop.xlane.xlu0 %129
    %v131 = vrcp.pop %v130
    %v132 = vmul.f32 %v127, %v131
    %133 = vrot.lane.b32.xlu0 %v82, 96
    %v134 = vpop.permute.xlu0 %133
    %v137 = vsel %vm121, %v132, 0
    %139 = vmatpush.msra.mxu0 0.0
    %140 = vmatpush.msra.mxu0 0.0
    %141 = vmatpush.msra.mxu0 0.0
    %142 = vmatpush.msra.mxu0 0.0
    %143 = vmatpush.msra.mxu0 0.0
    %144 = vmatpush.msra.mxu0 0.0
    %145 = vmatpush.msra.mxu0 0.0
    %146 = vmatpush.msra.mxu0 0.0
    %147 = vmatpush.msra.mxu0 0.0
    %148 = vmatpush.msra.mxu0 0.0
    %149 = vmatpush.msra.mxu0 0.0
    %150 = vmatpush.msra.mxu0 0.0
    %151 = vmatpush.msra.mxu0 0.0
    %152 = vmatpush.msra.mxu0 0.0
    %153 = vmatpush.msra.mxu0 0.0
    %154 = vmatpush.msra.mxu0 %v134
    %155 = vmatmul.f32.gmra.mxu0 %v137
    %v156 = vpop.f32.mrf.mxu0
    %v157 = vadd.f32 0.0, %v156
    %158 = vdwg.mxu0
    %159 = vst.msk [vmem:[#allocation7] sm:$0xff] %vm95, %v157
    %161 = vrot.lane.b32.xlu0 %v85, 112
    %v162 = vpop.permute.xlu0 %161
    %v163 = vsel %vm95, %v85, 0
    %v165 = vsel %vm95, %v162, 0
    %167 = vmatpush.xpose.msra.mxu0 0.0
    %168 = vmatpush.xpose.msra.mxu0 0.0
    %169 = vmatpush.xpose.msra.mxu0 0.0
    %170 = vmatpush.xpose.msra.mxu0 0.0
    %171 = vmatpush.xpose.msra.mxu0 0.0
    %172 = vmatpush.xpose.msra.mxu0 0.0
    %173 = vmatpush.xpose.msra.mxu0 0.0
    %174 = vmatpush.xpose.msra.mxu0 0.0
    %175 = vmatpush.xpose.msra.mxu0 0.0
    %176 = vmatpush.xpose.msra.mxu0 0.0
    %177 = vmatpush.xpose.msra.mxu0 0.0
    %178 = vmatpush.xpose.msra.mxu0 0.0
    %179 = vmatpush.xpose.msra.mxu0 0.0
    %180 = vmatpush.xpose.msra.mxu0 0.0
    %181 = vmatpush.xpose.msra.mxu0 0.0
    %182 = vmatpush.xpose.msra.mxu0 %v165
    %183 = vmatmul.f32.gmra.mxu0 %v163
    %v184 = vpop.f32.mrf.mxu0
    %v185 = vadd.f32 0.0, %v184
    %186 = vdwg.mxu0
    %v187 = vsel %vm91, %v185, -inf
    %v188 = vsel %vm121, %v187, -inf
    %189 = vmax.xlane.f32.xlu0 %v188
    %v190 = vpop.xlane.xlu0 %189
    %v191 = vsub.f32 %v187, %v190
    %v192 = vmul.f32 %v191, 1.442695
    %v193 = vpow.pop %v192
    %v194 = vsel %vm121, %v193, 0.0
    %195 = vadd.xlane.f32.xlu0 %v194
    %v196 = vpop.xlane.xlu0 %195
    %v197 = vrcp.pop %v196
    %v198 = vmul.f32 %v193, %v197
    %199 = vrot.lane.b32.xlu0 %v85, 96
    %v200 = vpop.permute.xlu0 %199
    %v203 = vsel %vm121, %v198, 0
    %205 = vmatpush.msra.mxu0 0.0
    %206 = vmatpush.msra.mxu0 0.0
    %207 = vmatpush.msra.mxu0 0.0
    %208 = vmatpush.msra.mxu0 0.0
    %209 = vmatpush.msra.mxu0 0.0
    %210 = vmatpush.msra.mxu0 0.0
    %211 = vmatpush.msra.mxu0 0.0
    %212 = vmatpush.msra.mxu0 0.0
    %213 = vmatpush.msra.mxu0 0.0
    %214 = vmatpush.msra.mxu0 0.0
    %215 = vmatpush.msra.mxu0 0.0
    %216 = vmatpush.msra.mxu0 0.0
    %217 = vmatpush.msra.mxu0 0.0
    %218 = vmatpush.msra.mxu0 0.0
    %219 = vmatpush.msra.mxu0 0.0
    %220 = vmatpush.msra.mxu0 %v200
    %221 = vmatmul.f32.gmra.mxu0 %v203
    %v222 = vpop.f32.mrf.mxu0
    %v223 = vadd.f32 0.0, %v222
    %224 = vdwg.mxu0
    %225 = vst.msk [vmem:[#allocation7 + $0x8] sm:$0xff] %vm95, %v223
    // Predicated region
    $region22: #{attention_head.1} parent=1 // pred_check
      _
    $region23: #{attention_head.1} parent=1 // pred_check_branch
      %227 = sbr.rel (0) target = $region25
    $region24: #{attention_head.1} parent=1 // pred_region
      %229 = vsyncadd [#allocation4], 0
      %s230 = sshll.u32 [#allocation7], 4
      %s231 = int_to_ptr.vmem [resolvable:$true] %s230
      %s232 = sshll.u32 %s3, 4
      %s233 = int_to_ptr.hbm [resolvable:$true] %s232
      %238 = dma.vmem_to_hbm [thread:$0]  %s231, 256, %s233, [#allocation4], 128, 128, 8
    $region25: #{attention_head.1} parent=1 // pred_fallthru
      _
    // Predicated region
    $region26: #{attention_head.1} parent=1 // pred_check
      _
    $region27: #{attention_head.1} parent=1 // pred_check_branch
      %240 = sbr.rel (0) target = $region29
    $region28: #{attention_head.1} parent=1 // pred_region
      %242 = dma.done [#allocation4], 256
    $region29: #{attention_head.1} parent=1 // pred_fallthru
      _
    %243 = vsyncpa [#allocation3], 1
    %244 = vsyncpa [#allocation6], 1
    %245 = vsyncpa [#allocation4], 1

</llo_original>
